<compile_context>
chip_gen: v7x
topology: tpu7x:2x2x1
jax: 0.10.0
libtpu: 0.0.40
codegen_flags: <defaults>
</compile_context>

<pallas_src>
import jax
import jax.numpy as jnp
from jax import lax
from jax.experimental import pallas as pl
from jax.experimental.pallas import tpu as pltpu


def _round_up(x, m):
    return (x + m - 1) // m * m


def _cdiv(a, b):
    return (a + b - 1) // b


# -----------------------------------------------------------------------------
# Small-n path: bit-exact row-copy gather.  Indices live in SMEM via scalar
# prefetch; the (padded) LUT sits in VMEM and rows are copied one at a time.
# At the production call site (~20 style ids) the kernel cost is dominated by
# the single LUT DMA, and the copies are a handful of vld/vst.
# -----------------------------------------------------------------------------
def _copy_gather_kernel(idx_smem, lut_ref, out_ref):
    n_rows = out_ref.shape[0]
    for r in range(n_rows):  # static trip count -> fully unrolled
        out_ref[pl.ds(r, 1), :] = lut_ref[pl.ds(idx_smem[r], 1), :]


def _gather_small(flat_idx, lut_pad, n_pad, d_style, out_dtype):
    n_style_pad = lut_pad.shape[0]
    grid_spec = pltpu.PrefetchScalarGridSpec(
        num_scalar_prefetch=1,
        grid=(1,),
        in_specs=[pl.BlockSpec((n_style_pad, d_style), lambda i, idx: (0, 0))],
        out_specs=pl.BlockSpec((n_pad, d_style), lambda i, idx: (0, 0)),
    )
    return pl.pallas_call(
        _copy_gather_kernel,
        out_shape=jax.ShapeDtypeStruct((n_pad, d_style), out_dtype),
        grid_spec=grid_spec,
        compiler_params=pltpu.CompilerParams(
            dimension_semantics=("arbitrary",)),
    )(flat_idx, lut_pad)


# -----------------------------------------------------------------------------
# Large-n path: blocked one-hot gather on the MXU.  LUT resident in VMEM
# (constant index_map), lane-dense 1024-wide output tiles, sublane-aligned
# blocks, HIGHEST precision so f32 rows are reproduced exactly.
# -----------------------------------------------------------------------------
def _onehot_gather_kernel(idx_ref, lut_ref, out_ref):
    block = idx_ref.shape[0]
    n_style_pad = lut_ref.shape[0]

    idx = idx_ref[...]                                               # (block, 1)
    cols = lax.broadcasted_iota(jnp.int32, (block, n_style_pad), 1)  # (block, K)
    one_hot = (idx == cols).astype(lut_ref.dtype)                    # (block, K)

    out_ref[...] = jnp.dot(
        one_hot, lut_ref[...],
        preferred_element_type=jnp.float32,
        precision=lax.Precision.HIGHEST,
    ).astype(out_ref.dtype)


def _gather_large(flat_idx2d, lut_pad, n_pad, block, d_style, out_dtype):
    n_style_pad = lut_pad.shape[0]
    out_bytes = jnp.dtype(out_dtype).itemsize
    lut_bytes = int(lut_pad.size) * lut_pad.dtype.itemsize
    est = (2 * block * d_style * out_bytes   # double-buffered output tiles
           + 2 * lut_bytes                   # LUT (worst case double-buffered)
           + block * n_style_pad * 4         # in-kernel one-hot intermediate
           + 2 * block * 4)                  # index tiles
    vmem_limit = int(min(max(2 * est, 16 * 1024 * 1024), 48 * 1024 * 1024))

    def build(lut_pipeline_mode):
        lut_kwargs = {}
        if lut_pipeline_mode is not None:
            lut_kwargs["pipeline_mode"] = lut_pipeline_mode
        return pl.pallas_call(
            _onehot_gather_kernel,
            out_shape=jax.ShapeDtypeStruct((n_pad, d_style), out_dtype),
            grid=(n_pad // block,),
            in_specs=[
                # Per-step block of indices.
                pl.BlockSpec((block, 1), lambda i: (i, 0)),
                # Whole LUT, constant index_map -> fetched once, reused.
                pl.BlockSpec((n_style_pad, d_style), lambda i: (0, 0),
                             **lut_kwargs),
            ],
            out_specs=pl.BlockSpec((block, d_style), lambda i: (i, 0)),
            compiler_params=pltpu.CompilerParams(
                dimension_semantics=("parallel",),
                vmem_limit_bytes=vmem_limit,
            ),
        )

    try:
        # LUT never changes across grid steps -> single-buffer it.
        return build(pl.Buffered(1))(flat_idx2d, lut_pad)
    except Exception:
        # Fallback for jax versions without BlockSpec.pipeline_mode support.
        return build(None)(flat_idx2d, lut_pad)


def style_embeddings(indices, lut, *, max_block_rows=512, small_n_rows=64):
    """Pallas equivalent of nn.Embedding(n_style, d_style)(indices).

    indices: integer array of any shape (OOB ids are clamped; torch raises).
    lut:     (n_style, d_style) float array (f32 or bf16).
    returns: indices.shape + (d_style,) array with the dtype of `lut`.
    """
    n_style, d_style = lut.shape
    orig_shape = indices.shape

    flat_idx = jnp.clip(indices.reshape(-1).astype(jnp.int32), 0, n_style - 1)
    n = flat_idx.shape[0]

    # Pad the LUT contraction dim to a multiple of 128: unmasked compares and
    # a full-depth MXU K pass.  Padded rows are never selected (idx clamped).
    n_style_pad = _round_up(n_style, 128)
    lut_pad = jnp.pad(lut, ((0, n_style_pad - n_style), (0, 0)))

    if n <= small_n_rows:
        # Bit-exact row-copy path for the tiny batches InpaintingNet uses.
        n_pad = _round_up(n, 8)
        idx = jnp.pad(flat_idx, (0, n_pad - n))
        out_flat = _gather_small(idx, lut_pad, n_pad, d_style, lut.dtype)
    else:
        # Balanced, sublane-aligned blocks so the last block carries less than
        # one sublane group of padding (no ~2x blowup for ragged n).
        n8 = _round_up(n, 8)
        num_blocks = _cdiv(n8, _round_up(max_block_rows, 8))
        block = _round_up(_cdiv(n8, num_blocks), 8)
        n_pad = block * num_blocks
        idx2d = jnp.pad(flat_idx, (0, n_pad - n))[:, None]
        out_flat = _gather_large(idx2d, lut_pad, n_pad, block, d_style,
                                 lut.dtype)

    return out_flat[:n].reshape(*orig_shape, d_style)


if __name__ == "__main__":
    # InpaintingNet uses StyleEmbeddings(n_style=100, d_style=1024); getSim
    # embeds ~10 style ids per batch element.
    n_style, d_style = 100, 1024

    key = jax.random.PRNGKey(0)
    k_lut, k_small, k_big = jax.random.split(key, 3)

    # nn.Embedding default init is N(0, 1); mirror with a fixed PRNG key.
    lut = jax.random.normal(k_lut, (n_style, d_style), dtype=jnp.float32)

    # 1) Real InpaintingNet.getSim-sized call (small-n row-copy path).
    x_small = jax.random.randint(k_small, (2, 10), minval=0, maxval=n_style,
                                 dtype=jnp.int32)
    out_small = jax.block_until_ready(style_embeddings(x_small, lut))
    assert out_small.shape == (2, 10, d_style), out_small.shape
    assert jnp.array_equal(out_small, lut[x_small]), "small-n path mismatch"

    # 2) Larger index batch to exercise the blocked one-hot MXU path (grid>1).
    x_big = jax.random.randint(k_big, (4, 300), minval=0, maxval=n_style,
                               dtype=jnp.int32)
    out_big = jax.block_until_ready(style_embeddings(x_big, lut))
    assert out_big.shape == (4, 300, d_style), out_big.shape
    assert jnp.allclose(out_big, lut[x_big], rtol=1e-6, atol=1e-6), \
        "large-n MXU path mismatch"

    print("KERNEL_OK")
</pallas_src>

<mosaic_0001>
module attributes {stable_mosaic.version = 11 : i64} {
  func.func @_copy_gather_kernel(%arg0: i32, %arg1: memref<24xi32, #tpu.memory_space<smem>>, %arg2: memref<128x1024xf32, #tpu.memory_space<vmem>>, %arg3: memref<24x1024xf32, #tpu.memory_space<vmem>>) attributes {dimension_semantics = [#tpu.dimension_semantics<arbitrary>], iteration_bounds = array<i64: 1>, scalar_prefetch = 1 : i64, scratch_operands = 0 : i64, tpu.core_type = #tpu.core_type<tc>, window_params = [{pipeline_mode = #tpu.pipeline_mode<synchronous>, transform_indices = @transform_0, window_bounds = array<i64: 128, 1024>}, {pipeline_mode = #tpu.pipeline_mode<synchronous>, transform_indices = @transform_1, window_bounds = array<i64: 24, 1024>}]} {
    %c0 = arith.constant 0 : index
    %0 = memref.load %arg1[%c0] : memref<24xi32, #tpu.memory_space<smem>>
    %1 = arith.index_cast %0 : i32 to index
    %c0_0 = arith.constant 0 : index
    %2 = vector.load %arg2[%1, %c0_0] : memref<128x1024xf32, #tpu.memory_space<vmem>>, vector<1x1024xf32>
    %c0_1 = arith.constant 0 : index
    %c0_2 = arith.constant 0 : index
    %3 = vector.load %arg3[%c0_1, %c0_2] : memref<24x1024xf32, #tpu.memory_space<vmem>>, vector<1x1024xf32>
    tpu.vector_store %arg3[%c0_1, %c0_2], %2 {strides = array<i32>} : memref<24x1024xf32, #tpu.memory_space<vmem>>, vector<1x1024xf32>,
    %c1 = arith.constant 1 : index
    %4 = memref.load %arg1[%c1] : memref<24xi32, #tpu.memory_space<smem>>
    %5 = arith.index_cast %4 : i32 to index
    %c0_3 = arith.constant 0 : index
    %6 = vector.load %arg2[%5, %c0_3] : memref<128x1024xf32, #tpu.memory_space<vmem>>, vector<1x1024xf32>
    %c1_4 = arith.constant 1 : index
    %c0_5 = arith.constant 0 : index
    %7 = vector.load %arg3[%c1_4, %c0_5] : memref<24x1024xf32, #tpu.memory_space<vmem>>, vector<1x1024xf32>
    tpu.vector_store %arg3[%c1_4, %c0_5], %6 {strides = array<i32>} : memref<24x1024xf32, #tpu.memory_space<vmem>>, vector<1x1024xf32>,
    %c2 = arith.constant 2 : index
    %8 = memref.load %arg1[%c2] : memref<24xi32, #tpu.memory_space<smem>>
    %9 = arith.index_cast %8 : i32 to index
    %c0_6 = arith.constant 0 : index
    %10 = vector.load %arg2[%9, %c0_6] : memref<128x1024xf32, #tpu.memory_space<vmem>>, vector<1x1024xf32>
    %c2_7 = arith.constant 2 : index
    %c0_8 = arith.constant 0 : index
    %11 = vector.load %arg3[%c2_7, %c0_8] : memref<24x1024xf32, #tpu.memory_space<vmem>>, vector<1x1024xf32>
    tpu.vector_store %arg3[%c2_7, %c0_8], %10 {strides = array<i32>} : memref<24x1024xf32, #tpu.memory_space<vmem>>, vector<1x1024xf32>,
    %c3 = arith.constant 3 : index
    %12 = memref.load %arg1[%c3] : memref<24xi32, #tpu.memory_space<smem>>
    %13 = arith.index_cast %12 : i32 to index
    %c0_9 = arith.constant 0 : index
    %14 = vector.load %arg2[%13, %c0_9] : memref<128x1024xf32, #tpu.memory_space<vmem>>, vector<1x1024xf32>
    %c3_10 = arith.constant 3 : index
    %c0_11 = arith.constant 0 : index
    %15 = vector.load %arg3[%c3_10, %c0_11] : memref<24x1024xf32, #tpu.memory_space<vmem>>, vector<1x1024xf32>
    tpu.vector_store %arg3[%c3_10, %c0_11], %14 {strides = array<i32>} : memref<24x1024xf32, #tpu.memory_space<vmem>>, vector<1x1024xf32>,
    %c4 = arith.constant 4 : index
    %16 = memref.load %arg1[%c4] : memref<24xi32, #tpu.memory_space<smem>>
    %17 = arith.index_cast %16 : i32 to index
    %c0_12 = arith.constant 0 : index
    %18 = vector.load %arg2[%17, %c0_12] : memref<128x1024xf32, #tpu.memory_space<vmem>>, vector<1x1024xf32>
    %c4_13 = arith.constant 4 : index
    %c0_14 = arith.constant 0 : index
    %19 = vector.load %arg3[%c4_13, %c0_14] : memref<24x1024xf32, #tpu.memory_space<vmem>>, vector<1x1024xf32>
    tpu.vector_store %arg3[%c4_13, %c0_14], %18 {strides = array<i32>} : memref<24x1024xf32, #tpu.memory_space<vmem>>, vector<1x1024xf32>,
    %c5 = arith.constant 5 : index
    %20 = memref.load %arg1[%c5] : memref<24xi32, #tpu.memory_space<smem>>
    %21 = arith.index_cast %20 : i32 to index
    %c0_15 = arith.constant 0 : index
    %22 = vector.load %arg2[%21, %c0_15] : memref<128x1024xf32, #tpu.memory_space<vmem>>, vector<1x1024xf32>
    %c5_16 = arith.constant 5 : index
    %c0_17 = arith.constant 0 : index
    %23 = vector.load %arg3[%c5_16, %c0_17] : memref<24x1024xf32, #tpu.memory_space<vmem>>, vector<1x1024xf32>
    tpu.vector_store %arg3[%c5_16, %c0_17], %22 {strides = array<i32>} : memref<24x1024xf32, #tpu.memory_space<vmem>>, vector<1x1024xf32>,
    %c6 = arith.constant 6 : index
    %24 = memref.load %arg1[%c6] : memref<24xi32, #tpu.memory_space<smem>>
    %25 = arith.index_cast %24 : i32 to index
    %c0_18 = arith.constant 0 : index
    %26 = vector.load %arg2[%25, %c0_18] : memref<128x1024xf32, #tpu.memory_space<vmem>>, vector<1x1024xf32>
    %c6_19 = arith.constant 6 : index
    %c0_20 = arith.constant 0 : index
    %27 = vector.load %arg3[%c6_19, %c0_20] : memref<24x1024xf32, #tpu.memory_space<vmem>>, vector<1x1024xf32>
    tpu.vector_store %arg3[%c6_19, %c0_20], %26 {strides = array<i32>} : memref<24x1024xf32, #tpu.memory_space<vmem>>, vector<1x1024xf32>,
    %c7 = arith.constant 7 : index
    %28 = memref.load %arg1[%c7] : memref<24xi32, #tpu.memory_space<smem>>
    %29 = arith.index_cast %28 : i32 to index
    %c0_21 = arith.constant 0 : index
    %30 = vector.load %arg2[%29, %c0_21] : memref<128x1024xf32, #tpu.memory_space<vmem>>, vector<1x1024xf32>
    %c7_22 = arith.constant 7 : index
    %c0_23 = arith.constant 0 : index
    %31 = vector.load %arg3[%c7_22, %c0_23] : memref<24x1024xf32, #tpu.memory_space<vmem>>, vector<1x1024xf32>
    tpu.vector_store %arg3[%c7_22, %c0_23], %30 {strides = array<i32>} : memref<24x1024xf32, #tpu.memory_space<vmem>>, vector<1x1024xf32>,
    %c8 = arith.constant 8 : index
    %32 = memref.load %arg1[%c8] : memref<24xi32, #tpu.memory_space<smem>>
    %33 = arith.index_cast %32 : i32 to index
    %c0_24 = arith.constant 0 : index
    %34 = vector.load %arg2[%33, %c0_24] : memref<128x1024xf32, #tpu.memory_space<vmem>>, vector<1x1024xf32>
    %c8_25 = arith.constant 8 : index
    %c0_26 = arith.constant 0 : index
    %35 = vector.load %arg3[%c8_25, %c0_26] : memref<24x1024xf32, #tpu.memory_space<vmem>>, vector<1x1024xf32>
    tpu.vector_store %arg3[%c8_25, %c0_26], %34 {strides = array<i32>} : memref<24x1024xf32, #tpu.memory_space<vmem>>, vector<1x1024xf32>,
    %c9 = arith.constant 9 : index
    %36 = memref.load %arg1[%c9] : memref<24xi32, #tpu.memory_space<smem>>
    %37 = arith.index_cast %36 : i32 to index
    %c0_27 = arith.constant 0 : index
    %38 = vector.load %arg2[%37, %c0_27] : memref<128x1024xf32, #tpu.memory_space<vmem>>, vector<1x1024xf32>
    %c9_28 = arith.constant 9 : index
    %c0_29 = arith.constant 0 : index
    %39 = vector.load %arg3[%c9_28, %c0_29] : memref<24x1024xf32, #tpu.memory_space<vmem>>, vector<1x1024xf32>
    tpu.vector_store %arg3[%c9_28, %c0_29], %38 {strides = array<i32>} : memref<24x1024xf32, #tpu.memory_space<vmem>>, vector<1x1024xf32>,
    %c10 = arith.constant 10 : index
    %40 = memref.load %arg1[%c10] : memref<24xi32, #tpu.memory_space<smem>>
    %41 = arith.index_cast %40 : i32 to index
    %c0_30 = arith.constant 0 : index
    %42 = vector.load %arg2[%41, %c0_30] : memref<128x1024xf32, #tpu.memory_space<vmem>>, vector<1x1024xf32>
    %c10_31 = arith.constant 10 : index
    %c0_32 = arith.constant 0 : index
    %43 = vector.load %arg3[%c10_31, %c0_32] : memref<24x1024xf32, #tpu.memory_space<vmem>>, vector<1x1024xf32>
    tpu.vector_store %arg3[%c10_31, %c0_32], %42 {strides = array<i32>} : memref<24x1024xf32, #tpu.memory_space<vmem>>, vector<1x1024xf32>,
    %c11 = arith.constant 11 : index
    %44 = memref.load %arg1[%c11] : memref<24xi32, #tpu.memory_space<smem>>
    %45 = arith.index_cast %44 : i32 to index
    %c0_33 = arith.constant 0 : index
    %46 = vector.load %arg2[%45, %c0_33] : memref<128x1024xf32, #tpu.memory_space<vmem>>, vector<1x1024xf32>
    %c11_34 = arith.constant 11 : index
    %c0_35 = arith.constant 0 : index
    %47 = vector.load %arg3[%c11_34, %c0_35] : memref<24x1024xf32, #tpu.memory_space<vmem>>, vector<1x1024xf32>
    tpu.vector_store %arg3[%c11_34, %c0_35], %46 {strides = array<i32>} : memref<24x1024xf32, #tpu.memory_space<vmem>>, vector<1x1024xf32>,
    %c12 = arith.constant 12 : index
    %48 = memref.load %arg1[%c12] : memref<24xi32, #tpu.memory_space<smem>>
    %49 = arith.index_cast %48 : i32 to index
    %c0_36 = arith.constant 0 : index
    %50 = vector.load %arg2[%49, %c0_36] : memref<128x1024xf32, #tpu.memory_space<vmem>>, vector<1x1024xf32>
    %c12_37 = arith.constant 12 : index
    %c0_38 = arith.constant 0 : index
    %51 = vector.load %arg3[%c12_37, %c0_38] : memref<24x1024xf32, #tpu.memory_space<vmem>>, vector<1x1024xf32>
    tpu.vector_store %arg3[%c12_37, %c0_38], %50 {strides = array<i32>} : memref<24x1024xf32, #tpu.memory_space<vmem>>, vector<1x1024xf32>,
    %c13 = arith.constant 13 : index
    %52 = memref.load %arg1[%c13] : memref<24xi32, #tpu.memory_space<smem>>
    %53 = arith.index_cast %52 : i32 to index
    %c0_39 = arith.constant 0 : index
    %54 = vector.load %arg2[%53, %c0_39] : memref<128x1024xf32, #tpu.memory_space<vmem>>, vector<1x1024xf32>
    %c13_40 = arith.constant 13 : index
    %c0_41 = arith.constant 0 : index
    %55 = vector.load %arg3[%c13_40, %c0_41] : memref<24x1024xf32, #tpu.memory_space<vmem>>, vector<1x1024xf32>
    tpu.vector_store %arg3[%c13_40, %c0_41], %54 {strides = array<i32>} : memref<24x1024xf32, #tpu.memory_space<vmem>>, vector<1x1024xf32>,
    %c14 = arith.constant 14 : index
    %56 = memref.load %arg1[%c14] : memref<24xi32, #tpu.memory_space<smem>>
    %57 = arith.index_cast %56 : i32 to index
    %c0_42 = arith.constant 0 : index
    %58 = vector.load %arg2[%57, %c0_42] : memref<128x1024xf32, #tpu.memory_space<vmem>>, vector<1x1024xf32>
    %c14_43 = arith.constant 14 : index
    %c0_44 = arith.constant 0 : index
    %59 = vector.load %arg3[%c14_43, %c0_44] : memref<24x1024xf32, #tpu.memory_space<vmem>>, vector<1x1024xf32>
    tpu.vector_store %arg3[%c14_43, %c0_44], %58 {strides = array<i32>} : memref<24x1024xf32, #tpu.memory_space<vmem>>, vector<1x1024xf32>,
    %c15 = arith.constant 15 : index
    %60 = memref.load %arg1[%c15] : memref<24xi32, #tpu.memory_space<smem>>
    %61 = arith.index_cast %60 : i32 to index
    %c0_45 = arith.constant 0 : index
    %62 = vector.load %arg2[%61, %c0_45] : memref<128x1024xf32, #tpu.memory_space<vmem>>, vector<1x1024xf32>
    %c15_46 = arith.constant 15 : index
    %c0_47 = arith.constant 0 : index
    %63 = vector.load %arg3[%c15_46, %c0_47] : memref<24x1024xf32, #tpu.memory_space<vmem>>, vector<1x1024xf32>
    tpu.vector_store %arg3[%c15_46, %c0_47], %62 {strides = array<i32>} : memref<24x1024xf32, #tpu.memory_space<vmem>>, vector<1x1024xf32>,
    %c16 = arith.constant 16 : index
    %64 = memref.load %arg1[%c16] : memref<24xi32, #tpu.memory_space<smem>>
    %65 = arith.index_cast %64 : i32 to index
    %c0_48 = arith.constant 0 : index
    %66 = vector.load %arg2[%65, %c0_48] : memref<128x1024xf32, #tpu.memory_space<vmem>>, vector<1x1024xf32>
    %c16_49 = arith.constant 16 : index
    %c0_50 = arith.constant 0 : index
    %67 = vector.load %arg3[%c16_49, %c0_50] : memref<24x1024xf32, #tpu.memory_space<vmem>>, vector<1x1024xf32>
    tpu.vector_store %arg3[%c16_49, %c0_50], %66 {strides = array<i32>} : memref<24x1024xf32, #tpu.memory_space<vmem>>, vector<1x1024xf32>,
    %c17 = arith.constant 17 : index
    %68 = memref.load %arg1[%c17] : memref<24xi32, #tpu.memory_space<smem>>
    %69 = arith.index_cast %68 : i32 to index
    %c0_51 = arith.constant 0 : index
    %70 = vector.load %arg2[%69, %c0_51] : memref<128x1024xf32, #tpu.memory_space<vmem>>, vector<1x1024xf32>
    %c17_52 = arith.constant 17 : index
    %c0_53 = arith.constant 0 : index
    %71 = vector.load %arg3[%c17_52, %c0_53] : memref<24x1024xf32, #tpu.memory_space<vmem>>, vector<1x1024xf32>
    tpu.vector_store %arg3[%c17_52, %c0_53], %70 {strides = array<i32>} : memref<24x1024xf32, #tpu.memory_space<vmem>>, vector<1x1024xf32>,
    %c18 = arith.constant 18 : index
    %72 = memref.load %arg1[%c18] : memref<24xi32, #tpu.memory_space<smem>>
    %73 = arith.index_cast %72 : i32 to index
    %c0_54 = arith.constant 0 : index
    %74 = vector.load %arg2[%73, %c0_54] : memref<128x1024xf32, #tpu.memory_space<vmem>>, vector<1x1024xf32>
    %c18_55 = arith.constant 18 : index
    %c0_56 = arith.constant 0 : index
    %75 = vector.load %arg3[%c18_55, %c0_56] : memref<24x1024xf32, #tpu.memory_space<vmem>>, vector<1x1024xf32>
    tpu.vector_store %arg3[%c18_55, %c0_56], %74 {strides = array<i32>} : memref<24x1024xf32, #tpu.memory_space<vmem>>, vector<1x1024xf32>,
    %c19 = arith.constant 19 : index
    %76 = memref.load %arg1[%c19] : memref<24xi32, #tpu.memory_space<smem>>
    %77 = arith.index_cast %76 : i32 to index
    %c0_57 = arith.constant 0 : index
    %78 = vector.load %arg2[%77, %c0_57] : memref<128x1024xf32, #tpu.memory_space<vmem>>, vector<1x1024xf32>
    %c19_58 = arith.constant 19 : index
    %c0_59 = arith.constant 0 : index
    %79 = vector.load %arg3[%c19_58, %c0_59] : memref<24x1024xf32, #tpu.memory_space<vmem>>, vector<1x1024xf32>
    tpu.vector_store %arg3[%c19_58, %c0_59], %78 {strides = array<i32>} : memref<24x1024xf32, #tpu.memory_space<vmem>>, vector<1x1024xf32>,
    %c20 = arith.constant 20 : index
    %80 = memref.load %arg1[%c20] : memref<24xi32, #tpu.memory_space<smem>>
    %81 = arith.index_cast %80 : i32 to index
    %c0_60 = arith.constant 0 : index
    %82 = vector.load %arg2[%81, %c0_60] : memref<128x1024xf32, #tpu.memory_space<vmem>>, vector<1x1024xf32>
    %c20_61 = arith.constant 20 : index
    %c0_62 = arith.constant 0 : index
    %83 = vector.load %arg3[%c20_61, %c0_62] : memref<24x1024xf32, #tpu.memory_space<vmem>>, vector<1x1024xf32>
    tpu.vector_store %arg3[%c20_61, %c0_62], %82 {strides = array<i32>} : memref<24x1024xf32, #tpu.memory_space<vmem>>, vector<1x1024xf32>,
    %c21 = arith.constant 21 : index
    %84 = memref.load %arg1[%c21] : memref<24xi32, #tpu.memory_space<smem>>
    %85 = arith.index_cast %84 : i32 to index
    %c0_63 = arith.constant 0 : index
    %86 = vector.load %arg2[%85, %c0_63] : memref<128x1024xf32, #tpu.memory_space<vmem>>, vector<1x1024xf32>
    %c21_64 = arith.constant 21 : index
    %c0_65 = arith.constant 0 : index
    %87 = vector.load %arg3[%c21_64, %c0_65] : memref<24x1024xf32, #tpu.memory_space<vmem>>, vector<1x1024xf32>
    tpu.vector_store %arg3[%c21_64, %c0_65], %86 {strides = array<i32>} : memref<24x1024xf32, #tpu.memory_space<vmem>>, vector<1x1024xf32>,
    %c22 = arith.constant 22 : index
    %88 = memref.load %arg1[%c22] : memref<24xi32, #tpu.memory_space<smem>>
    %89 = arith.index_cast %88 : i32 to index
    %c0_66 = arith.constant 0 : index
    %90 = vector.load %arg2[%89, %c0_66] : memref<128x1024xf32, #tpu.memory_space<vmem>>, vector<1x1024xf32>
    %c22_67 = arith.constant 22 : index
    %c0_68 = arith.constant 0 : index
    %91 = vector.load %arg3[%c22_67, %c0_68] : memref<24x1024xf32, #tpu.memory_space<vmem>>, vector<1x1024xf32>
    tpu.vector_store %arg3[%c22_67, %c0_68], %90 {strides = array<i32>} : memref<24x1024xf32, #tpu.memory_space<vmem>>, vector<1x1024xf32>,
    %c23 = arith.constant 23 : index
    %92 = memref.load %arg1[%c23] : memref<24xi32, #tpu.memory_space<smem>>
    %93 = arith.index_cast %92 : i32 to index
    %c0_69 = arith.constant 0 : index
    %94 = vector.load %arg2[%93, %c0_69] : memref<128x1024xf32, #tpu.memory_space<vmem>>, vector<1x1024xf32>
    %c23_70 = arith.constant 23 : index
    %c0_71 = arith.constant 0 : index
    %95 = vector.load %arg3[%c23_70, %c0_71] : memref<24x1024xf32, #tpu.memory_space<vmem>>, vector<1x1024xf32>
    tpu.vector_store %arg3[%c23_70, %c0_71], %94 {strides = array<i32>} : memref<24x1024xf32, #tpu.memory_space<vmem>>, vector<1x1024xf32>,
    return
  }
  func.func @transform_0(%arg0: i32, %arg1: memref<24xi32, #tpu.memory_space<smem>>) -> (i32, i32) {
    %c0_i32 = arith.constant 0 : i32
    %c0_i32_0 = arith.constant 0 : i32
    %c0_i32_1 = arith.constant 0 : i32
    return %c0_i32, %c0_i32_0 : i32, i32
  }
  func.func @transform_1(%arg0: i32, %arg1: memref<24xi32, #tpu.memory_space<smem>>) -> (i32, i32) {
    %c0_i32 = arith.constant 0 : i32
    %c0_i32_0 = arith.constant 0 : i32
    %c0_i32_1 = arith.constant 0 : i32
    return %c0_i32, %c0_i32_0 : i32, i32
  }
}

</mosaic_0001>

<llo_original>
// kernel: tpu_custom_call.1
$region0: #{tpu_custom_call.1}
  #allocation0 [shape = 'u32[]', space=smem, size = 0x4, offset = 0x4, fixed_abs, tag = 'smem constant byte address 0x4 - core index']
  #allocation1 [shape = 'u32[144,128]{1,0:T(1,128)}', space=vmem, size = 0x12000, scoped, tag = 'internal scratch']
  #allocation2 [shape = 's32[1]{0}', space=sflag, size = 0x4, scoped, tag = 'scoped memory for tpu_custom_call.1']
  #allocation3 [shape = 'u8[512]{0}', space=smem, size = 0x200, scoped, tag = 'prefetched SMEM operand 0']
  %s0 = inlined_call_operand.hbm [shape: s32[24], index: 0, kind: input, shape index: {}]
  %s1 = inlined_call_operand.hbm [shape: f32[128,1024], index: 1, kind: input, shape index: {}]
  %s2 = inlined_call_operand.hbm [shape: f32[24,1024], index: 2, kind: output, shape index: {}]
  %s3 = sld [smem:[#allocation0]]
  $region18: #{tpu_custom_call.1} parent=0
    _
  %s5 = ssub.s32 1, %s3
  %s6 = scalar_select 0, %s5, %s3
  %8 = dma.hbm_to_smem %s0, 16, [#allocation3], [#allocation2]
  %9 = dma.done [#allocation2], 16
  %10 = sfence
  $region1: #{tpu_custom_call.1} parent=0
    #allocation4 [shape = 'u8[524288]{0}', space=vmem, size = 0x80000, scoped, tag = 'input window, operand 1, single buffered']
    #allocation5 [shape = 's32[1]{0}', space=sflag, size = 0x4, scoped, tag = 'scoped memory for tpu_custom_call.1']
    #allocation6 [shape = 's32[1]{0}', space=sflag, size = 0x4, scoped, tag = 'scoped memory for tpu_custom_call.1']
    #allocation7 [shape = 'u8[98304]{0}', space=vmem, size = 0x18000, scoped, tag = 'output window, operand 0, single buffered']
    %11 = vsyncpa [#allocation5], 0
    %12 = vsyncpa [#allocation6], 0
    // Predicated region
    $region2: #{tpu_custom_call.1} parent=1 // pred_check
      _
    $region3: #{tpu_custom_call.1} parent=1 // pred_check_branch
      %14 = sbr.rel (0) target = $region5
    $region4: #{tpu_custom_call.1} parent=1 // pred_region
      %s16 = ssub.s32 16384, 16384
      %17 = vsyncadd [#allocation5], %s16
      %s18 = sshll.u32 [#allocation4], 4
      %s19 = int_to_ptr.vmem [resolvable:$true] %s18
      %24 = dma.hbm_to_vmem [thread:$0]  %s1, 16384, %s19, [#allocation5], 1024, 1024, 64
    $region5: #{tpu_custom_call.1} parent=1 // pred_fallthru
      _
    // Predicated region
    $region6: #{tpu_custom_call.1} parent=1 // pred_check
      _
    $region7: #{tpu_custom_call.1} parent=1 // pred_check_branch
      %26 = sbr.rel (0) target = $region9
    $region8: #{tpu_custom_call.1} parent=1 // pred_region
      %27 = dma.done [#allocation5], 16384
    $region9: #{tpu_custom_call.1} parent=1 // pred_fallthru
      _
    %s28 = sld [smem:[#allocation3]]
    %s29 = sshra.s32 %s28, 3
    %s30 = sand.u32 %s28, 7
    %s31 = sshra.s32 %s28, 3
    %s32 = sand.u32 %s28, 7
    %s33 = smul.u32 %s29, 8
    %s34 = smul.u32 %s33, 8
    %s35 = sadd.s32 %s34, %s32
    %s36 = scalar_lea.vmem [#allocation4], %s35
    %v37 = vld [vmem:[%s36] ss:$8 sm:$0xf]
    %v38 = vld [vmem:[%s36] ss:$8 sm:$0xf0]
    %v39 = vor.u32 %v37, %v38
    %40 = vst [vmem:[#allocation7] ss:$8 sm:$0xf] %v39
    %41 = vst [vmem:[#allocation7] ss:$8 sm:$0xf0] %v39
    %s42 = sld [smem:[#allocation3 + $0x1]]
    %s43 = sshra.s32 %s42, 3
    %s44 = sand.u32 %s42, 7
    %s45 = sshra.s32 %s42, 3
    %s46 = sand.u32 %s42, 7
    %s47 = smul.u32 %s43, 8
    %s48 = smul.u32 %s47, 8
    %s49 = sadd.s32 %s48, %s46
    %s50 = scalar_lea.vmem [#allocation4], %s49
    %v51 = vld [vmem:[%s50] ss:$8 sm:$0xf]
    %v52 = vld [vmem:[%s50] ss:$8 sm:$0xf0]
    %v53 = vor.u32 %v51, %v52
    %s54 = scalar_lea.vmem [#allocation7], 1
    %55 = vst [vmem:[%s54] ss:$8 sm:$0xf] %v53
    %56 = vst [vmem:[%s54] ss:$8 sm:$0xf0] %v53
    %s57 = sld [smem:[#allocation3 + $0x2]]
    %s58 = sshra.s32 %s57, 3
    %s59 = sand.u32 %s57, 7
    %s60 = sshra.s32 %s57, 3
    %s61 = sand.u32 %s57, 7
    %s62 = smul.u32 %s58, 8
    %s63 = smul.u32 %s62, 8
    %s64 = sadd.s32 %s63, %s61
    %s65 = scalar_lea.vmem [#allocation4], %s64
    %v66 = vld [vmem:[%s65] ss:$8 sm:$0xf]
    %v67 = vld [vmem:[%s65] ss:$8 sm:$0xf0]
    %v68 = vor.u32 %v66, %v67
    %s69 = scalar_lea.vmem [#allocation7], 2
    %70 = vst [vmem:[%s69] ss:$8 sm:$0xf] %v68
    %71 = vst [vmem:[%s69] ss:$8 sm:$0xf0] %v68
    %s72 = sld [smem:[#allocation3 + $0x3]]
    %s73 = sshra.s32 %s72, 3
    %s74 = sand.u32 %s72, 7
    %s75 = sshra.s32 %s72, 3
    %s76 = sand.u32 %s72, 7
    %s77 = smul.u32 %s73, 8
    %s78 = smul.u32 %s77, 8
    %s79 = sadd.s32 %s78, %s76
    %s80 = scalar_lea.vmem [#allocation4], %s79
    %v81 = vld [vmem:[%s80] ss:$8 sm:$0xf]
    %v82 = vld [vmem:[%s80] ss:$8 sm:$0xf0]
    %v83 = vor.u32 %v81, %v82
    %s84 = scalar_lea.vmem [#allocation7], 3
    %85 = vst [vmem:[%s84] ss:$8 sm:$0xf] %v83
    %86 = vst [vmem:[%s84] ss:$8 sm:$0xf0] %v83
    %s87 = sld [smem:[#allocation3 + $0x4]]
    %s88 = sshra.s32 %s87, 3
    %s89 = sand.u32 %s87, 7
    %s90 = sshra.s32 %s87, 3
    %s91 = sand.u32 %s87, 7
    %s92 = smul.u32 %s88, 8
    %s93 = smul.u32 %s92, 8
    %s94 = sadd.s32 %s93, %s91
    %s95 = scalar_lea.vmem [#allocation4], %s94
    %v96 = vld [vmem:[%s95] ss:$8 sm:$0xf]
    %v97 = vld [vmem:[%s95] ss:$8 sm:$0xf0]
    %v98 = vor.u32 %v96, %v97
    %s99 = scalar_lea.vmem [#allocation7], 4
    %100 = vst [vmem:[%s99] ss:$8 sm:$0xf] %v98
    %101 = vst [vmem:[%s99] ss:$8 sm:$0xf0] %v98
    %s102 = sld [smem:[#allocation3 + $0x5]]
    %s103 = sshra.s32 %s102, 3
    %s104 = sand.u32 %s102, 7
    %s105 = sshra.s32 %s102, 3
    %s106 = sand.u32 %s102, 7
    %s107 = smul.u32 %s103, 8
    %s108 = smul.u32 %s107, 8
    %s109 = sadd.s32 %s108, %s106
    %s110 = scalar_lea.vmem [#allocation4], %s109
    %v111 = vld [vmem:[%s110] ss:$8 sm:$0xf]
    %v112 = vld [vmem:[%s110] ss:$8 sm:$0xf0]
    %v113 = vor.u32 %v111, %v112
    %s114 = scalar_lea.vmem [#allocation7], 5
    %115 = vst [vmem:[%s114] ss:$8 sm:$0xf] %v113
    %116 = vst [vmem:[%s114] ss:$8 sm:$0xf0] %v113
    %s117 = sld [smem:[#allocation3 + $0x6]]
    %s118 = sshra.s32 %s117, 3
    %s119 = sand.u32 %s117, 7
    %s120 = sshra.s32 %s117, 3
    %s121 = sand.u32 %s117, 7
    %s122 = smul.u32 %s118, 8
    %s123 = smul.u32 %s122, 8
    %s124 = sadd.s32 %s123, %s121
    %s125 = scalar_lea.vmem [#allocation4], %s124
    %v126 = vld [vmem:[%s125] ss:$8 sm:$0xf]
    %v127 = vld [vmem:[%s125] ss:$8 sm:$0xf0]
    %v128 = vor.u32 %v126, %v127
    %s129 = scalar_lea.vmem [#allocation7], 6
    %130 = vst [vmem:[%s129] ss:$8 sm:$0xf] %v128
    %131 = vst [vmem:[%s129] ss:$8 sm:$0xf0] %v128
    %s132 = sld [smem:[#allocation3 + $0x7]]
    %s133 = sshra.s32 %s132, 3
    %s134 = sand.u32 %s132, 7
    %s135 = sshra.s32 %s132, 3
    %s136 = sand.u32 %s132, 7
    %s137 = smul.u32 %s133, 8
    %s138 = smul.u32 %s137, 8
    %s139 = sadd.s32 %s138, %s136
    %s140 = scalar_lea.vmem [#allocation4], %s139
    %v141 = vld [vmem:[%s140] ss:$8 sm:$0xf]
    %v142 = vld [vmem:[%s140] ss:$8 sm:$0xf0]
    %v143 = vor.u32 %v141, %v142
    %s144 = scalar_lea.vmem [#allocation7], 7
    %145 = vst [vmem:[%s144] ss:$8 sm:$0xf] %v143
    %146 = vst [vmem:[%s144] ss:$8 sm:$0xf0] %v143
    %s147 = sld [smem:[#allocation3 + $0x8]]
    %s148 = sshra.s32 %s147, 3
    %s149 = sand.u32 %s147, 7
    %s150 = sshra.s32 %s147, 3
    %s151 = sand.u32 %s147, 7
    %s152 = smul.u32 %s148, 8
    %s153 = smul.u32 %s152, 8
    %s154 = sadd.s32 %s153, %s151
    %s155 = scalar_lea.vmem [#allocation4], %s154
    %v156 = vld [vmem:[%s155] ss:$8 sm:$0xf]
    %v157 = vld [vmem:[%s155] ss:$8 sm:$0xf0]
    %v158 = vor.u32 %v156, %v157
    %s159 = scalar_lea.vmem [#allocation7], 64
    %160 = vst [vmem:[%s159] ss:$8 sm:$0xf] %v158
    %161 = vst [vmem:[%s159] ss:$8 sm:$0xf0] %v158
    %s162 = sld [smem:[#allocation3 + $0x9]]
    %s163 = sshra.s32 %s162, 3
    %s164 = sand.u32 %s162, 7
    %s165 = sshra.s32 %s162, 3
    %s166 = sand.u32 %s162, 7
    %s167 = smul.u32 %s163, 8
    %s168 = smul.u32 %s167, 8
    %s169 = sadd.s32 %s168, %s166
    %s170 = scalar_lea.vmem [#allocation4], %s169
    %v171 = vld [vmem:[%s170] ss:$8 sm:$0xf]
    %v172 = vld [vmem:[%s170] ss:$8 sm:$0xf0]
    %v173 = vor.u32 %v171, %v172
    %s174 = scalar_lea.vmem [#allocation7], 65
    %175 = vst [vmem:[%s174] ss:$8 sm:$0xf] %v173
    %176 = vst [vmem:[%s174] ss:$8 sm:$0xf0] %v173
    %s177 = sld [smem:[#allocation3 + $0xa]]
    %s178 = sshra.s32 %s177, 3
    %s179 = sand.u32 %s177, 7
    %s180 = sshra.s32 %s177, 3
    %s181 = sand.u32 %s177, 7
    %s182 = smul.u32 %s178, 8
    %s183 = smul.u32 %s182, 8
    %s184 = sadd.s32 %s183, %s181
    %s185 = scalar_lea.vmem [#allocation4], %s184
    %v186 = vld [vmem:[%s185] ss:$8 sm:$0xf]
    %v187 = vld [vmem:[%s185] ss:$8 sm:$0xf0]
    %v188 = vor.u32 %v186, %v187
    %s189 = scalar_lea.vmem [#allocation7], 66
    %190 = vst [vmem:[%s189] ss:$8 sm:$0xf] %v188
    %191 = vst [vmem:[%s189] ss:$8 sm:$0xf0] %v188
    %s192 = sld [smem:[#allocation3 + $0xb]]
    %s193 = sshra.s32 %s192, 3
    %s194 = sand.u32 %s192, 7
    %s195 = sshra.s32 %s192, 3
    %s196 = sand.u32 %s192, 7
    %s197 = smul.u32 %s193, 8
    %s198 = smul.u32 %s197, 8
    %s199 = sadd.s32 %s198, %s196
    %s200 = scalar_lea.vmem [#allocation4], %s199
    %v201 = vld [vmem:[%s200] ss:$8 sm:$0xf]
    %v202 = vld [vmem:[%s200] ss:$8 sm:$0xf0]
    %v203 = vor.u32 %v201, %v202
    %s204 = scalar_lea.vmem [#allocation7], 67
    %205 = vst [vmem:[%s204] ss:$8 sm:$0xf] %v203
    %206 = vst [vmem:[%s204] ss:$8 sm:$0xf0] %v203
    %s207 = sld [smem:[#allocation3 + $0xc]]
    %s208 = sshra.s32 %s207, 3
    %s209 = sand.u32 %s207, 7
    %s210 = sshra.s32 %s207, 3
    %s211 = sand.u32 %s207, 7
    %s212 = smul.u32 %s208, 8
    %s213 = smul.u32 %s212, 8
    %s214 = sadd.s32 %s213, %s211
    %s215 = scalar_lea.vmem [#allocation4], %s214
    %v216 = vld [vmem:[%s215] ss:$8 sm:$0xf]
    %v217 = vld [vmem:[%s215] ss:$8 sm:$0xf0]
    %v218 = vor.u32 %v216, %v217
    %s219 = scalar_lea.vmem [#allocation7], 68
    %220 = vst [vmem:[%s219] ss:$8 sm:$0xf] %v218
    %221 = vst [vmem:[%s219] ss:$8 sm:$0xf0] %v218
    %s222 = sld [smem:[#allocation3 + $0xd]]
    %s223 = sshra.s32 %s222, 3
    %s224 = sand.u32 %s222, 7
    %s225 = sshra.s32 %s222, 3
    %s226 = sand.u32 %s222, 7
    %s227 = smul.u32 %s223, 8
    %s228 = smul.u32 %s227, 8
    %s229 = sadd.s32 %s228, %s226
    %s230 = scalar_lea.vmem [#allocation4], %s229
    %v231 = vld [vmem:[%s230] ss:$8 sm:$0xf]
    %v232 = vld [vmem:[%s230] ss:$8 sm:$0xf0]
    %v233 = vor.u32 %v231, %v232
    %s234 = scalar_lea.vmem [#allocation7], 69
    %235 = vst [vmem:[%s234] ss:$8 sm:$0xf] %v233
    %236 = vst [vmem:[%s234] ss:$8 sm:$0xf0] %v233
    %s237 = sld [smem:[#allocation3 + $0xe]]
    %s238 = sshra.s32 %s237, 3
    %s239 = sand.u32 %s237, 7
    %s240 = sshra.s32 %s237, 3
    %s241 = sand.u32 %s237, 7
    %s242 = smul.u32 %s238, 8
    %s243 = smul.u32 %s242, 8
    %s244 = sadd.s32 %s243, %s241
    %s245 = scalar_lea.vmem [#allocation4], %s244
    %v246 = vld [vmem:[%s245] ss:$8 sm:$0xf]
    %v247 = vld [vmem:[%s245] ss:$8 sm:$0xf0]
    %v248 = vor.u32 %v246, %v247
    %s249 = scalar_lea.vmem [#allocation7], 70
    %250 = vst [vmem:[%s249] ss:$8 sm:$0xf] %v248
    %251 = vst [vmem:[%s249] ss:$8 sm:$0xf0] %v248
    %s252 = sld [smem:[#allocation3 + $0xf]]
    %s253 = sshra.s32 %s252, 3
    %s254 = sand.u32 %s252, 7
    %s255 = sshra.s32 %s252, 3
    %s256 = sand.u32 %s252, 7
    %s257 = smul.u32 %s253, 8
    %s258 = smul.u32 %s257, 8
    %s259 = sadd.s32 %s258, %s256
    %s260 = scalar_lea.vmem [#allocation4], %s259
    %v261 = vld [vmem:[%s260] ss:$8 sm:$0xf]
    %v262 = vld [vmem:[%s260] ss:$8 sm:$0xf0]
    %v263 = vor.u32 %v261, %v262
    %s264 = scalar_lea.vmem [#allocation7], 71
    %265 = vst [vmem:[%s264] ss:$8 sm:$0xf] %v263
    %266 = vst [vmem:[%s264] ss:$8 sm:$0xf0] %v263
    %s267 = sld [smem:[#allocation3 + $0x10]]
    %s268 = sshra.s32 %s267, 3
    %s269 = sand.u32 %s267, 7
    %s270 = sshra.s32 %s267, 3
    %s271 = sand.u32 %s267, 7
    %s272 = smul.u32 %s268, 8
    %s273 = smul.u32 %s272, 8
    %s274 = sadd.s32 %s273, %s271
    %s275 = scalar_lea.vmem [#allocation4], %s274
    %v276 = vld [vmem:[%s275] ss:$8 sm:$0xf]
    %v277 = vld [vmem:[%s275] ss:$8 sm:$0xf0]
    %v278 = vor.u32 %v276, %v277
    %s279 = scalar_lea.vmem [#allocation7], 128
    %280 = vst [vmem:[%s279] ss:$8 sm:$0xf] %v278
    %281 = vst [vmem:[%s279] ss:$8 sm:$0xf0] %v278
    %s282 = sld [smem:[#allocation3 + $0x11]]
    %s283 = sshra.s32 %s282, 3
    %s284 = sand.u32 %s282, 7
    %s285 = sshra.s32 %s282, 3
    %s286 = sand.u32 %s282, 7
    %s287 = smul.u32 %s283, 8
    %s288 = smul.u32 %s287, 8
    %s289 = sadd.s32 %s288, %s286
    %s290 = scalar_lea.vmem [#allocation4], %s289
    %v291 = vld [vmem:[%s290] ss:$8 sm:$0xf]
    %v292 = vld [vmem:[%s290] ss:$8 sm:$0xf0]
    %v293 = vor.u32 %v291, %v292
    %s294 = scalar_lea.vmem [#allocation7], 129
    %295 = vst [vmem:[%s294] ss:$8 sm:$0xf] %v293
    %296 = vst [vmem:[%s294] ss:$8 sm:$0xf0] %v293
    %s297 = sld [smem:[#allocation3 + $0x12]]
    %s298 = sshra.s32 %s297, 3
    %s299 = sand.u32 %s297, 7
    %s300 = sshra.s32 %s297, 3
    %s301 = sand.u32 %s297, 7
    %s302 = smul.u32 %s298, 8
    %s303 = smul.u32 %s302, 8
    %s304 = sadd.s32 %s303, %s301
    %s305 = scalar_lea.vmem [#allocation4], %s304
    %v306 = vld [vmem:[%s305] ss:$8 sm:$0xf]
    %v307 = vld [vmem:[%s305] ss:$8 sm:$0xf0]
    %v308 = vor.u32 %v306, %v307
    %s309 = scalar_lea.vmem [#allocation7], 130
    %310 = vst [vmem:[%s309] ss:$8 sm:$0xf] %v308
    %311 = vst [vmem:[%s309] ss:$8 sm:$0xf0] %v308
    %s312 = sld [smem:[#allocation3 + $0x13]]
    %s313 = sshra.s32 %s312, 3
    %s314 = sand.u32 %s312, 7
    %s315 = sshra.s32 %s312, 3
    %s316 = sand.u32 %s312, 7
    %s317 = smul.u32 %s313, 8
    %s318 = smul.u32 %s317, 8
    %s319 = sadd.s32 %s318, %s316
    %s320 = scalar_lea.vmem [#allocation4], %s319
    %v321 = vld [vmem:[%s320] ss:$8 sm:$0xf]
    %v322 = vld [vmem:[%s320] ss:$8 sm:$0xf0]
    %v323 = vor.u32 %v321, %v322
    %s324 = scalar_lea.vmem [#allocation7], 131
    %325 = vst [vmem:[%s324] ss:$8 sm:$0xf] %v323
    %326 = vst [vmem:[%s324] ss:$8 sm:$0xf0] %v323
    %s327 = sld [smem:[#allocation3 + $0x14]]
    %s328 = sshra.s32 %s327, 3
    %s329 = sand.u32 %s327, 7
    %s330 = sshra.s32 %s327, 3
    %s331 = sand.u32 %s327, 7
    %s332 = smul.u32 %s328, 8
    %s333 = smul.u32 %s332, 8
    %s334 = sadd.s32 %s333, %s331
    %s335 = scalar_lea.vmem [#allocation4], %s334
    %v336 = vld [vmem:[%s335] ss:$8 sm:$0xf]
    %v337 = vld [vmem:[%s335] ss:$8 sm:$0xf0]
    %v338 = vor.u32 %v336, %v337
    %s339 = scalar_lea.vmem [#allocation7], 132
    %340 = vst [vmem:[%s339] ss:$8 sm:$0xf] %v338
    %341 = vst [vmem:[%s339] ss:$8 sm:$0xf0] %v338
    %s342 = sld [smem:[#allocation3 + $0x15]]
    %s343 = sshra.s32 %s342, 3
    %s344 = sand.u32 %s342, 7
    %s345 = sshra.s32 %s342, 3
    %s346 = sand.u32 %s342, 7
    %s347 = smul.u32 %s343, 8
    %s348 = smul.u32 %s347, 8
    %s349 = sadd.s32 %s348, %s346
    %s350 = scalar_lea.vmem [#allocation4], %s349
    %v351 = vld [vmem:[%s350] ss:$8 sm:$0xf]
    %v352 = vld [vmem:[%s350] ss:$8 sm:$0xf0]
    %v353 = vor.u32 %v351, %v352
    %s354 = scalar_lea.vmem [#allocation7], 133
    %355 = vst [vmem:[%s354] ss:$8 sm:$0xf] %v353
    %356 = vst [vmem:[%s354] ss:$8 sm:$0xf0] %v353
    %s357 = sld [smem:[#allocation3 + $0x16]]
    %s358 = sshra.s32 %s357, 3
    %s359 = sand.u32 %s357, 7
    %s360 = sshra.s32 %s357, 3
    %s361 = sand.u32 %s357, 7
    %s362 = smul.u32 %s358, 8
    %s363 = smul.u32 %s362, 8
    %s364 = sadd.s32 %s363, %s361
    %s365 = scalar_lea.vmem [#allocation4], %s364
    %v366 = vld [vmem:[%s365] ss:$8 sm:$0xf]
    %v367 = vld [vmem:[%s365] ss:$8 sm:$0xf0]
    %v368 = vor.u32 %v366, %v367
    %s369 = scalar_lea.vmem [#allocation7], 134
    %370 = vst [vmem:[%s369] ss:$8 sm:$0xf] %v368
    %371 = vst [vmem:[%s369] ss:$8 sm:$0xf0] %v368
    %s372 = sld [smem:[#allocation3 + $0x17]]
    %s373 = sshra.s32 %s372, 3
    %s374 = sand.u32 %s372, 7
    %s375 = sshra.s32 %s372, 3
    %s376 = sand.u32 %s372, 7
    %s377 = smul.u32 %s373, 8
    %s378 = smul.u32 %s377, 8
    %s379 = sadd.s32 %s378, %s376
    %s380 = scalar_lea.vmem [#allocation4], %s379
    %v381 = vld [vmem:[%s380] ss:$8 sm:$0xf]
    %v382 = vld [vmem:[%s380] ss:$8 sm:$0xf0]
    %v383 = vor.u32 %v381, %v382
    %s384 = scalar_lea.vmem [#allocation7], 135
    %385 = vst [vmem:[%s384] ss:$8 sm:$0xf] %v383
    %386 = vst [vmem:[%s384] ss:$8 sm:$0xf0] %v383
    // Predicated region
    $region10: #{tpu_custom_call.1} parent=1 // pred_check
      _
    $region11: #{tpu_custom_call.1} parent=1 // pred_check_branch
      %388 = sbr.rel (0) target = $region13
    $region12: #{tpu_custom_call.1} parent=1 // pred_region
      %s390 = ssub.s32 3072, 3072
      %391 = vsyncadd [#allocation6], %s390
      %s392 = sshll.u32 [#allocation7], 4
      %s393 = int_to_ptr.vmem [resolvable:$true] %s392
      %398 = dma.vmem_to_hbm [thread:$0]  %s393, 3072, %s2, [#allocation6], 1024, 1024, 64
    $region13: #{tpu_custom_call.1} parent=1 // pred_fallthru
      _
    // Predicated region
    $region14: #{tpu_custom_call.1} parent=1 // pred_check
      _
    $region15: #{tpu_custom_call.1} parent=1 // pred_check_branch
      %400 = sbr.rel (0) target = $region17
    $region16: #{tpu_custom_call.1} parent=1 // pred_region
      %401 = dma.done [#allocation6], 3072
    $region17: #{tpu_custom_call.1} parent=1 // pred_fallthru
      _
    %402 = vsyncpa [#allocation5], 1
    %403 = vsyncpa [#allocation6], 1

</llo_original>
